<compile_context>
chip_gen: v5e
topology: v5e:2x2
jax: 0.10.0
libtpu: 0.0.40
codegen_flags: <defaults>
</compile_context>

<pallas_src>
import functools

import jax
import jax.numpy as jnp
from jax.experimental import pallas as pl
from jax.experimental.pallas import tpu as pltpu


def _graph_layer_kernel(adj_ref, p_ref, cx_ref, nb_ref, cew_ref, new_ref,
                        co_ref, no_ref):
    # adj_ref : (tm, Np)  bf16   streamed row block of the adjacency
    # p_ref   : (Np, Gp)  bf16   resident  (ce+ne) @ W^T
    # cx_ref  : (tm, 1)   f32    row-tiled center code
    # nb_ref  : (tm, 1)   f32    row-tiled neighbor code
    # cew_ref : (tm, Gp)  f32    row-tiled ce @ W^T + b
    # new_ref : (tm, Gp)  f32    row-tiled ne @ W^T + b
    # co_ref / no_ref : (tm, Gp) f32 lane-dense outputs
    slope = jnp.float32(0.01)   # nn.LeakyReLU default negative_slope

    # Single fused aggregation matmul (bf16 operands, f32 accumulation).
    t = jnp.dot(adj_ref[...], p_ref[...],
                preferred_element_type=jnp.float32)          # (tm, Gp)

    yc = cew_ref[...] + cx_ref[...] * t
    yn = new_ref[...] + nb_ref[...] * t

    co_ref[...] = jnp.where(yc > 0.0, yc, slope * yc)
    no_ref[...] = jnp.where(yn > 0.0, yn, slope * yn)


def _round_up(x: int, m: int) -> int:
    return -(-x // m) * m


def _choose_tiling(code_num: int,
                   min_steps: int = 4,
                   max_adj_block_bytes: int = 16 << 20):
    """Pad node count to a 128 multiple and pick a 128-aligned row tile.

    Prefers the largest tile that still leaves >= min_steps grid steps
    (so each TensorCore on v7x gets multiple iterations and the adj DMA is
    hidden) while the double-buffered bf16 adj block stays within budget.
    """
    npad = _round_up(max(code_num, 1), 128)
    tm = 128
    for cand in (1024, 512, 256, 128):
        if (npad % cand == 0
                and npad // cand >= min_steps
                and 2 * cand * npad * 2 <= max_adj_block_bytes):
            tm = cand
            break
    return npad, tm


def _vmem_limit_bytes(npad: int, gp: int, tm: int) -> int:
    def tiled(rows, cols, itemsize):
        sub = 8 * (4 // itemsize)                 # 8 sublanes f32, 16 bf16
        r = -(-rows // sub) * sub
        c = -(-cols // 128) * 128
        return r * c * itemsize

    est = 0
    est += 2 * tiled(tm, npad, 2)                 # adj row block (bf16), 2 buffers
    est += 2 * tiled(npad, gp, 2)                 # P resident (bf16)
    est += 2 * 2 * tiled(tm, 1, 4)                # cx, nb row tiles
    est += 2 * 2 * tiled(tm, gp, 4)               # CEW, NEW row tiles
    est += 2 * 2 * tiled(tm, gp, 4)               # two outputs, 2 buffers
    est += 4 * tiled(tm, gp, 4)                   # in-kernel temporaries
    limit = int(1.5 * est) + (4 << 20)
    # Cap with headroom below v7x's 64 MiB/TC physical VMEM; valid on v5e/v6e too.
    return max(16 << 20, min(limit, 56 << 20))


@functools.partial(jax.jit)
def graph_layer_forward(code_x, neighbor, c_embeddings, n_embeddings, adj, w, b):
    """
    code_x, neighbor : (code_num,) float32
    c_embeddings, n_embeddings : (code_num, code_size) float32
    adj : (code_num, code_num) float32 (0/1 adjacency)
    w   : (graph_size, code_size) float32  (PyTorch nn.Linear weight layout)
    b   : (graph_size,) float32
    returns (co, no), each (code_num, graph_size) float32
    """
    code_num, code_size = c_embeddings.shape
    graph_size = w.shape[0]

    # ---------------- wrapper prepass (runs once, tiny) -----------------
    cx = code_x.reshape(code_num, 1).astype(jnp.float32)
    nb = neighbor.reshape(code_num, 1).astype(jnp.float32)
    ce = cx * c_embeddings.astype(jnp.float32)                 # (N, C)
    ne = nb * n_embeddings.astype(jnp.float32)                 # (N, C)

    gp = _round_up(max(graph_size, 1), 128)                    # lane-dense G
    wt = jnp.transpose(w).astype(jnp.float32)                  # (C, G)
    wt_p = jnp.pad(wt, ((0, 0), (0, gp - graph_size)))         # (C, Gp)
    b_p = jnp.pad(b.astype(jnp.float32),
                  (0, gp - graph_size)).reshape(1, gp)         # (1, Gp)

    p_f32 = (ce + ne) @ wt_p                                   # (N, Gp)
    cew = ce @ wt_p + b_p                                      # (N, Gp)
    new_ = ne @ wt_p + b_p                                     # (N, Gp)

    npad, tm = _choose_tiling(code_num)
    pad_n = npad - code_num

    adj_p = jnp.pad(adj.astype(jnp.bfloat16), ((0, pad_n), (0, pad_n)))
    p_bf16 = jnp.pad(p_f32, ((0, pad_n), (0, 0))).astype(jnp.bfloat16)
    cew_p = jnp.pad(cew, ((0, pad_n), (0, 0)))
    new_p = jnp.pad(new_, ((0, pad_n), (0, 0)))
    cx_p = jnp.pad(cx, ((0, pad_n), (0, 0)))
    nb_p = jnp.pad(nb, ((0, pad_n), (0, 0)))

    grid = (npad // tm,)
    vmem_limit = _vmem_limit_bytes(npad, gp, tm)

    co_p, no_p = pl.pallas_call(
        _graph_layer_kernel,
        out_shape=(jax.ShapeDtypeStruct((npad, gp), jnp.float32),
                   jax.ShapeDtypeStruct((npad, gp), jnp.float32)),
        grid_spec=pltpu.PrefetchScalarGridSpec(
            num_scalar_prefetch=0,
            grid=grid,
            in_specs=[
                pl.BlockSpec((tm, npad), lambda i: (i, 0)),    # adj row block
                pl.BlockSpec((npad, gp), lambda i: (0, 0)),    # P (resident)
                pl.BlockSpec((tm, 1), lambda i: (i, 0)),       # cx row tile
                pl.BlockSpec((tm, 1), lambda i: (i, 0)),       # nb row tile
                pl.BlockSpec((tm, gp), lambda i: (i, 0)),      # CEW row tile
                pl.BlockSpec((tm, gp), lambda i: (i, 0)),      # NEW row tile
            ],
            out_specs=[
                pl.BlockSpec((tm, gp), lambda i: (i, 0)),      # co (lane-dense)
                pl.BlockSpec((tm, gp), lambda i: (i, 0)),      # no (lane-dense)
            ],
        ),
        compiler_params=pltpu.CompilerParams(
            dimension_semantics=("parallel",),    # row tiles split across TCs
            vmem_limit_bytes=vmem_limit,
        ),
    )(adj_p, p_bf16, cx_p, nb_p, cew_p, new_p)

    co = co_p[:code_num, :graph_size]
    no = no_p[:code_num, :graph_size]
    return co, no


def _reference(code_x, neighbor, c_emb, n_emb, adj, w, b):
    # Faithful (unfused) translation of GraphLayer.forward.
    cx = code_x[:, None]
    nb = neighbor[:, None]
    ce = cx * c_emb
    ne = nb * n_emb
    cc = cx * (adj @ ce)
    cn = cx * (adj @ ne)
    nn_ = nb * (adj @ ne)
    nc = nb * (adj @ ce)
    co = ce + cc + cn
    no = ne + nn_ + nc

    def dense_act(x):
        y = x @ w.T + b
        return jnp.where(y > 0, y, 0.01 * y)

    return dense_act(co), dense_act(no)


if __name__ == "__main__":
    # Small synthetic shapes consistent with the module's forward
    # (code_num nodes, code_size embeddings, graph_size dense output).
    code_num, code_size, graph_size = 512, 32, 24

    key = jax.random.PRNGKey(0)
    k = jax.random.split(key, 7)
    code_x = (jax.random.uniform(k[0], (code_num,)) > 0.5).astype(jnp.float32)
    neighbor = (jax.random.uniform(k[1], (code_num,)) > 0.5).astype(jnp.float32)
    c_embeddings = 0.2 * jax.random.normal(k[2], (code_num, code_size), jnp.float32)
    n_embeddings = 0.2 * jax.random.normal(k[3], (code_num, code_size), jnp.float32)
    adj = (jax.random.uniform(k[4], (code_num, code_num)) > 0.7).astype(jnp.float32)
    # nn.Linear-style params (graph_size x code_size) and bias.
    w = 0.1 * jax.random.normal(k[5], (graph_size, code_size), jnp.float32)
    b = 0.1 * jax.random.normal(k[6], (graph_size,), jnp.float32)

    co, no = graph_layer_forward(code_x, neighbor, c_embeddings, n_embeddings,
                                 adj, w, b)
    jax.block_until_ready((co, no))

    co_ref, no_ref = _reference(code_x, neighbor, c_embeddings, n_embeddings,
                                adj, w, b)
    # Tolerances account for the documented bf16-operand aggregation matmul
    # (adj exact in bf16, P rounded once) vs. the f32 reference.
    assert co.shape == (code_num, graph_size) and no.shape == (code_num, graph_size)
    assert jnp.allclose(co, co_ref, atol=5e-2, rtol=5e-2), \
        f"co mismatch, max abs diff {float(jnp.max(jnp.abs(co - co_ref)))}"
    assert jnp.allclose(no, no_ref, atol=5e-2, rtol=5e-2), \
        f"no mismatch, max abs diff {float(jnp.max(jnp.abs(no - no_ref)))}"
    print("KERNEL_OK")
</pallas_src>

<mosaic_0001>
module attributes {stable_mosaic.version = 11 : i64} {
  func.func @_graph_layer_kernel(%arg0: i32, %arg1: memref<128x512xbf16, #tpu.memory_space<vmem>>, %arg2: memref<512x128xbf16, #tpu.memory_space<vmem>>, %arg3: memref<128x1xf32, #tpu.memory_space<vmem>>, %arg4: memref<128x1xf32, #tpu.memory_space<vmem>>, %arg5: memref<128x128xf32, #tpu.memory_space<vmem>>, %arg6: memref<128x128xf32, #tpu.memory_space<vmem>>, %arg7: memref<128x128xf32, #tpu.memory_space<vmem>>, %arg8: memref<128x128xf32, #tpu.memory_space<vmem>>) attributes {dimension_semantics = [#tpu.dimension_semantics<parallel>], iteration_bounds = array<i64: 4>, scalar_prefetch = 0 : i64, scratch_operands = 0 : i64, tpu.core_type = #tpu.core_type<tc>, window_params = [{transform_indices = @transform_0, window_bounds = array<i64: 128, 512>}, {pipeline_mode = #tpu.pipeline_mode<synchronous>, transform_indices = @transform_1, window_bounds = array<i64: 512, 128>}, {transform_indices = @transform_2, window_bounds = array<i64: 128, 1>}, {transform_indices = @transform_3, window_bounds = array<i64: 128, 1>}, {transform_indices = @transform_4, window_bounds = array<i64: 128, 128>}, {transform_indices = @transform_5, window_bounds = array<i64: 128, 128>}, {transform_indices = @transform_6, window_bounds = array<i64: 128, 128>}, {transform_indices = @transform_7, window_bounds = array<i64: 128, 128>}]} {
    %c0 = arith.constant 0 : index
    %c0_0 = arith.constant 0 : index
    %0 = vector.load %arg1[%c0, %c0_0] : memref<128x512xbf16, #tpu.memory_space<vmem>>, vector<128x512xbf16>
    %c0_1 = arith.constant 0 : index
    %c0_2 = arith.constant 0 : index
    %1 = vector.load %arg2[%c0_1, %c0_2] : memref<512x128xbf16, #tpu.memory_space<vmem>>, vector<512x128xbf16>
    %cst = arith.constant dense<0.000000e+00> : vector<128x128xf32>
    %2 = tpu.matmul %0, %1, %cst {dimension_numbers = #tpu.dot_dimension_numbers<[1], [0], [0], [1], [0, 0, 1, 1], [], []>} : vector<128x512xbf16>, vector<512x128xbf16>, vector<128x128xf32> -> vector<128x128xf32>
    %c0_3 = arith.constant 0 : index
    %c0_4 = arith.constant 0 : index
    %3 = vector.load %arg5[%c0_3, %c0_4] : memref<128x128xf32, #tpu.memory_space<vmem>>, vector<128x128xf32>
    %c0_5 = arith.constant 0 : index
    %c0_6 = arith.constant 0 : index
    %4 = vector.load %arg3[%c0_5, %c0_6] : memref<128x1xf32, #tpu.memory_space<vmem>>, vector<128x1xf32>
    %5 = vector.broadcast %4 : vector<128x1xf32> to vector<128x128xf32>
    %6 = arith.mulf %5, %2 : vector<128x128xf32>
    %7 = arith.addf %3, %6 : vector<128x128xf32>
    %c0_7 = arith.constant 0 : index
    %c0_8 = arith.constant 0 : index
    %8 = vector.load %arg6[%c0_7, %c0_8] : memref<128x128xf32, #tpu.memory_space<vmem>>, vector<128x128xf32>
    %c0_9 = arith.constant 0 : index
    %c0_10 = arith.constant 0 : index
    %9 = vector.load %arg4[%c0_9, %c0_10] : memref<128x1xf32, #tpu.memory_space<vmem>>, vector<128x1xf32>
    %10 = vector.broadcast %9 : vector<128x1xf32> to vector<128x128xf32>
    %11 = arith.mulf %10, %2 : vector<128x128xf32>
    %12 = arith.addf %8, %11 : vector<128x128xf32>
    %cst_11 = arith.constant 0.000000e+00 : f32
    %13 = vector.broadcast %cst_11 : f32 to vector<128x128xf32>
    %14 = arith.cmpf ogt, %7, %13 : vector<128x128xf32>
    %cst_12 = arith.constant 0.00999999977 : f32
    %15 = vector.broadcast %cst_12 : f32 to vector<128x128xf32>
    %16 = arith.mulf %15, %7 : vector<128x128xf32>
    %17 = arith.select %14, %7, %16 : vector<128x128xi1>, vector<128x128xf32>
    %c0_13 = arith.constant 0 : index
    %c0_14 = arith.constant 0 : index
    %18 = vector.load %arg7[%c0_13, %c0_14] : memref<128x128xf32, #tpu.memory_space<vmem>>, vector<128x128xf32>
    tpu.vector_store %arg7[%c0_13, %c0_14], %17 {strides = array<i32>} : memref<128x128xf32, #tpu.memory_space<vmem>>, vector<128x128xf32>,
    %cst_15 = arith.constant 0.000000e+00 : f32
    %19 = vector.broadcast %cst_15 : f32 to vector<128x128xf32>
    %20 = arith.cmpf ogt, %12, %19 : vector<128x128xf32>
    %cst_16 = arith.constant 0.00999999977 : f32
    %21 = vector.broadcast %cst_16 : f32 to vector<128x128xf32>
    %22 = arith.mulf %21, %12 : vector<128x128xf32>
    %23 = arith.select %20, %12, %22 : vector<128x128xi1>, vector<128x128xf32>
    %c0_17 = arith.constant 0 : index
    %c0_18 = arith.constant 0 : index
    %24 = vector.load %arg8[%c0_17, %c0_18] : memref<128x128xf32, #tpu.memory_space<vmem>>, vector<128x128xf32>
    tpu.vector_store %arg8[%c0_17, %c0_18], %23 {strides = array<i32>} : memref<128x128xf32, #tpu.memory_space<vmem>>, vector<128x128xf32>,
    return
  }
  func.func @transform_0(%arg0: i32) -> (i32, i32) {
    %c0_i32 = arith.constant 0 : i32
    %c0_i32_0 = arith.constant 0 : i32
    return %arg0, %c0_i32 : i32, i32
  }
  func.func @transform_1(%arg0: i32) -> (i32, i32) {
    %c0_i32 = arith.constant 0 : i32
    %c0_i32_0 = arith.constant 0 : i32
    %c0_i32_1 = arith.constant 0 : i32
    return %c0_i32, %c0_i32_0 : i32, i32
  }
  func.func @transform_2(%arg0: i32) -> (i32, i32) {
    %c0_i32 = arith.constant 0 : i32
    %c0_i32_0 = arith.constant 0 : i32
    return %arg0, %c0_i32 : i32, i32
  }
  func.func @transform_3(%arg0: i32) -> (i32, i32) {
    %c0_i32 = arith.constant 0 : i32
    %c0_i32_0 = arith.constant 0 : i32
    return %arg0, %c0_i32 : i32, i32
  }
  func.func @transform_4(%arg0: i32) -> (i32, i32) {
    %c0_i32 = arith.constant 0 : i32
    %c0_i32_0 = arith.constant 0 : i32
    return %arg0, %c0_i32 : i32, i32
  }
  func.func @transform_5(%arg0: i32) -> (i32, i32) {
    %c0_i32 = arith.constant 0 : i32
    %c0_i32_0 = arith.constant 0 : i32
    return %arg0, %c0_i32 : i32, i32
  }
  func.func @transform_6(%arg0: i32) -> (i32, i32) {
    %c0_i32 = arith.constant 0 : i32
    %c0_i32_0 = arith.constant 0 : i32
    return %arg0, %c0_i32 : i32, i32
  }
  func.func @transform_7(%arg0: i32) -> (i32, i32) {
    %c0_i32 = arith.constant 0 : i32
    %c0_i32_0 = arith.constant 0 : i32
    return %arg0, %c0_i32 : i32, i32
  }
}

</mosaic_0001>

<llo_original>
// kernel: graph_layer_forward.1
$region0: #{graph_layer_forward.1}
  #allocation0 [shape = 'u32[]', space=smem, size = 0x4, offset = 0x4, fixed_abs, tag = 'smem constant byte address 0x4 - core index']
  #allocation1 [shape = 'u32[72,128]{1,0:T(1,128)}', space=vmem, size = 0x9000, scoped, tag = 'internal scratch']
  %s0 = inlined_call_operand.vmem [shape: bf16[512,512], index: 0, kind: input, shape index: {}]
  %s1 = inlined_call_operand.vmem [shape: bf16[512,128], index: 1, kind: input, shape index: {}]
  %s2 = inlined_call_operand.vmem [shape: f32[512,1], index: 2, kind: input, shape index: {}]
  %s3 = inlined_call_operand.vmem [shape: f32[512,1], index: 3, kind: input, shape index: {}]
  %s4 = inlined_call_operand.vmem [shape: f32[512,128], index: 4, kind: input, shape index: {}]
  %s5 = inlined_call_operand.vmem [shape: f32[512,128], index: 5, kind: input, shape index: {}]
  %s6 = inlined_call_operand.vmem [shape: f32[512,128], index: 6, kind: output, shape index: {0}]
  %s7 = inlined_call_operand.vmem [shape: f32[512,128], index: 7, kind: output, shape index: {1}]
  %8 = xla_tuple %s6, %s7
  %s9 = sld [smem:[#allocation0]]
  $region65: #{graph_layer_forward.1} parent=0
    _
  %s11 = ssub.s32 1, %s9
  %s12 = scalar_select 0, %s11, %s9
  loop: start=0, step=1, limit=6
  $region2: #{graph_layer_forward.1} parent=0 // loop_pre_header
    _
  $region3: #{graph_layer_forward.1} parent=0 // loop_header
    %s14 = sphi 0, %s18
    %p15 = scmp.ge.s32.totalorder %s14, 6
    %s24 = sphi 0, %s26
    %s27 = sphi 0, %s24
    %s28 = sphi 0, %s27
    %s44 = sphi 0, %s28
    %s48 = sphi 0, %s48
    %s50 = sphi 0, %s48
    %s51 = sphi 0, %s50
    %s65 = sphi 0, %s51
    %s71 = sphi 0, %s73
    %s74 = sphi 0, %s71
    %s75 = sphi 0, %s74
    %s91 = sphi 0, %s75
    %s97 = sphi 0, %s99
    %s100 = sphi 0, %s97
    %s101 = sphi 0, %s100
    %s117 = sphi 0, %s101
    %s123 = sphi 0, %s125
    %s126 = sphi 0, %s123
    %s127 = sphi 0, %s126
    %s143 = sphi 0, %s127
    %s149 = sphi 0, %s151
    %s152 = sphi 0, %s149
    %s153 = sphi 0, %s152
    %s169 = sphi 0, %s153
    %s175 = sphi 0, %s177
    %s178 = sphi 0, %s175
    %s179 = sphi 0, %s178
    %s195 = sphi 0, %s179
    %s201 = sphi 0, %s203
    %s204 = sphi 0, %s201
    %s205 = sphi 0, %s204
    %s221 = sphi 0, %s205
  $region4: #{graph_layer_forward.1} parent=0 // loop_header_branch
    %17 = sbr.rel (%p15) target = $region8
  $region5: #{graph_layer_forward.1} parent=0 // loop_body
    %s19 = ssub.s32 %s14, 1
    %s20 = ssub.s32 %s14, 2
    %s21 = sadd.s32 %s14, 1
    %s22 = ssub.s32 %s14, %s21
    %p23 = scmp.eq.s32.totalorder %s22, 0
    %s25 = sadd.s32 %s24, 1
    %s26 = scalar_select %p23, %s24, %s25
    %p29 = pneg %p23
    %p30 = scmp.eq.s32.totalorder %s14, 3
    %p31 = por %p29, %p30
    %p32 = scmp.ne.s32.totalorder %s24, %s27
    %p33 = scmp.eq.s32.totalorder %s14, 0
    %p34 = por %p32, %p33
    %p35 = scmp.ne.s32.totalorder %s24, %s27
    %p36 = scmp.eq.s32.totalorder %s19, 3
    %p37 = por %p35, %p36
    %p38 = scmp.ne.s32.totalorder %s27, %s28
    %p39 = scmp.eq.s32.totalorder %s19, 0
    %p40 = por %p38, %p39
    %p41 = scmp.ne.s32.totalorder %s27, %s28
    %p42 = scmp.eq.s32.totalorder %s20, 3
    %p43 = por %p41, %p42
    %p45 = scmp.ne.s32.totalorder %s28, %s44
    %p46 = scmp.eq.s32.totalorder %s20, 0
    %p47 = por %p45, %p46
    %s49 = sadd.s32 %s48, 1
    %p52 = scmp.eq.s32.totalorder %s14, 3
    %p53 = scmp.ne.s32.totalorder %s48, %s50
    %p54 = scmp.eq.s32.totalorder %s14, 0
    %p55 = por %p53, %p54
    %p56 = scmp.ne.s32.totalorder %s48, %s50
    %p57 = scmp.eq.s32.totalorder %s19, 3
    %p58 = por %p56, %p57
    %p59 = scmp.ne.s32.totalorder %s50, %s51
    %p60 = scmp.eq.s32.totalorder %s19, 0
    %p61 = por %p59, %p60
    %p62 = scmp.ne.s32.totalorder %s50, %s51
    %p63 = scmp.eq.s32.totalorder %s20, 3
    %p64 = por %p62, %p63
    %p66 = scmp.ne.s32.totalorder %s51, %s65
    %p67 = scmp.eq.s32.totalorder %s20, 0
    %p68 = por %p66, %p67
    %s69 = ssub.s32 %s14, %s21
    %p70 = scmp.eq.s32.totalorder %s69, 0
    %s72 = sadd.s32 %s71, 1
    %s73 = scalar_select %p70, %s71, %s72
    %p76 = pneg %p70
    %p77 = scmp.eq.s32.totalorder %s14, 3
    %p78 = por %p76, %p77
    %p79 = scmp.ne.s32.totalorder %s71, %s74
    %p80 = scmp.eq.s32.totalorder %s14, 0
    %p81 = por %p79, %p80
    %p82 = scmp.ne.s32.totalorder %s71, %s74
    %p83 = scmp.eq.s32.totalorder %s19, 3
    %p84 = por %p82, %p83
    %p85 = scmp.ne.s32.totalorder %s74, %s75
    %p86 = scmp.eq.s32.totalorder %s19, 0
    %p87 = por %p85, %p86
    %p88 = scmp.ne.s32.totalorder %s74, %s75
    %p89 = scmp.eq.s32.totalorder %s20, 3
    %p90 = por %p88, %p89
    %p92 = scmp.ne.s32.totalorder %s75, %s91
    %p93 = scmp.eq.s32.totalorder %s20, 0
    %p94 = por %p92, %p93
    %s95 = ssub.s32 %s14, %s21
    %p96 = scmp.eq.s32.totalorder %s95, 0
    %s98 = sadd.s32 %s97, 1
    %s99 = scalar_select %p96, %s97, %s98
    %p102 = pneg %p96
    %p103 = scmp.eq.s32.totalorder %s14, 3
    %p104 = por %p102, %p103
    %p105 = scmp.ne.s32.totalorder %s97, %s100
    %p106 = scmp.eq.s32.totalorder %s14, 0
    %p107 = por %p105, %p106
    %p108 = scmp.ne.s32.totalorder %s97, %s100
    %p109 = scmp.eq.s32.totalorder %s19, 3
    %p110 = por %p108, %p109
    %p111 = scmp.ne.s32.totalorder %s100, %s101
    %p112 = scmp.eq.s32.totalorder %s19, 0
    %p113 = por %p111, %p112
    %p114 = scmp.ne.s32.totalorder %s100, %s101
    %p115 = scmp.eq.s32.totalorder %s20, 3
    %p116 = por %p114, %p115
    %p118 = scmp.ne.s32.totalorder %s101, %s117
    %p119 = scmp.eq.s32.totalorder %s20, 0
    %p120 = por %p118, %p119
    %s121 = ssub.s32 %s14, %s21
    %p122 = scmp.eq.s32.totalorder %s121, 0
    %s124 = sadd.s32 %s123, 1
    %s125 = scalar_select %p122, %s123, %s124
    %p128 = pneg %p122
    %p129 = scmp.eq.s32.totalorder %s14, 3
    %p130 = por %p128, %p129
    %p131 = scmp.ne.s32.totalorder %s123, %s126
    %p132 = scmp.eq.s32.totalorder %s14, 0
    %p133 = por %p131, %p132
    %p134 = scmp.ne.s32.totalorder %s123, %s126
    %p135 = scmp.eq.s32.totalorder %s19, 3
    %p136 = por %p134, %p135
    %p137 = scmp.ne.s32.totalorder %s126, %s127
    %p138 = scmp.eq.s32.totalorder %s19, 0
    %p139 = por %p137, %p138
    %p140 = scmp.ne.s32.totalorder %s126, %s127
    %p141 = scmp.eq.s32.totalorder %s20, 3
    %p142 = por %p140, %p141
    %p144 = scmp.ne.s32.totalorder %s127, %s143
    %p145 = scmp.eq.s32.totalorder %s20, 0
    %p146 = por %p144, %p145
    %s147 = ssub.s32 %s14, %s21
    %p148 = scmp.eq.s32.totalorder %s147, 0
    %s150 = sadd.s32 %s149, 1
    %s151 = scalar_select %p148, %s149, %s150
    %p154 = pneg %p148
    %p155 = scmp.eq.s32.totalorder %s14, 3
    %p156 = por %p154, %p155
    %p157 = scmp.ne.s32.totalorder %s149, %s152
    %p158 = scmp.eq.s32.totalorder %s14, 0
    %p159 = por %p157, %p158
    %p160 = scmp.ne.s32.totalorder %s149, %s152
    %p161 = scmp.eq.s32.totalorder %s19, 3
    %p162 = por %p160, %p161
    %p163 = scmp.ne.s32.totalorder %s152, %s153
    %p164 = scmp.eq.s32.totalorder %s19, 0
    %p165 = por %p163, %p164
    %p166 = scmp.ne.s32.totalorder %s152, %s153
    %p167 = scmp.eq.s32.totalorder %s20, 3
    %p168 = por %p166, %p167
    %p170 = scmp.ne.s32.totalorder %s153, %s169
    %p171 = scmp.eq.s32.totalorder %s20, 0
    %p172 = por %p170, %p171
    %s173 = ssub.s32 %s14, %s21
    %p174 = scmp.eq.s32.totalorder %s173, 0
    %s176 = sadd.s32 %s175, 1
    %s177 = scalar_select %p174, %s175, %s176
    %p180 = pneg %p174
    %p181 = scmp.eq.s32.totalorder %s14, 3
    %p182 = por %p180, %p181
    %p183 = scmp.ne.s32.totalorder %s175, %s178
    %p184 = scmp.eq.s32.totalorder %s14, 0
    %p185 = por %p183, %p184
    %p186 = scmp.ne.s32.totalorder %s175, %s178
    %p187 = scmp.eq.s32.totalorder %s19, 3
    %p188 = por %p186, %p187
    %p189 = scmp.ne.s32.totalorder %s178, %s179
    %p190 = scmp.eq.s32.totalorder %s19, 0
    %p191 = por %p189, %p190
    %p192 = scmp.ne.s32.totalorder %s178, %s179
    %p193 = scmp.eq.s32.totalorder %s20, 3
    %p194 = por %p192, %p193
    %p196 = scmp.ne.s32.totalorder %s179, %s195
    %p197 = scmp.eq.s32.totalorder %s20, 0
    %p198 = por %p196, %p197
    %s199 = ssub.s32 %s14, %s21
    %p200 = scmp.eq.s32.totalorder %s199, 0
    %s202 = sadd.s32 %s201, 1
    %s203 = scalar_select %p200, %s201, %s202
    %p206 = pneg %p200
    %p207 = scmp.eq.s32.totalorder %s14, 3
    %p208 = por %p206, %p207
    %p209 = scmp.ne.s32.totalorder %s201, %s204
    %p210 = scmp.eq.s32.totalorder %s14, 0
    %p211 = por %p209, %p210
    %p212 = scmp.ne.s32.totalorder %s201, %s204
    %p213 = scmp.eq.s32.totalorder %s19, 3
    %p214 = por %p212, %p213
    %p215 = scmp.ne.s32.totalorder %s204, %s205
    %p216 = scmp.eq.s32.totalorder %s19, 0
    %p217 = por %p215, %p216
    %p218 = scmp.ne.s32.totalorder %s204, %s205
    %p219 = scmp.eq.s32.totalorder %s20, 3
    %p220 = por %p218, %p219
    %p222 = scmp.ne.s32.totalorder %s205, %s221
    %p223 = scmp.eq.s32.totalorder %s20, 0
    %p224 = por %p222, %p223
    %p225 = scmp.le.s32.totalorder 1, %s14
    %p226 = scmp.lt.s32.totalorder %s14, 5
    %p227 = pnand %p225, %p226
    %p228 = pneg %p227
    // Predicated region
    $region9: #{graph_layer_forward.1} parent=5 // pred_check
      _
    $region10: #{graph_layer_forward.1} parent=5 // pred_check_branch
      %230 = sbr.rel (%p227) target = $region12
    $region11: #{graph_layer_forward.1} parent=5 // pred_region
      %s231 = ssub.s32 %s14, 1
      // Predicated region
      $region13: #{graph_layer_forward.1} parent=11 // pred_check
        %p232 = pneg %p61
      $region14: #{graph_layer_forward.1} parent=11 // pred_check_branch
        %234 = sbr.rel (%p232) target = $region16
      $region15: #{graph_layer_forward.1} parent=11 // pred_region
        _
      $region16: #{graph_layer_forward.1} parent=11 // pred_fallthru
        _
    $region12: #{graph_layer_forward.1} parent=5 // pred_fallthru
      _
    %p235 = scmp.lt.s32.totalorder %s14, 4
    // Predicated region
    $region17: #{graph_layer_forward.1} parent=5 // pred_check
      %p236 = pneg %p235
    $region18: #{graph_layer_forward.1} parent=5 // pred_check_branch
      %238 = sbr.rel (%p236) target = $region20
    $region19: #{graph_layer_forward.1} parent=5 // pred_region
      // Predicated region
      $region21: #{graph_layer_forward.1} parent=19 // pred_check
        %p239 = pneg %p34
      $region22: #{graph_layer_forward.1} parent=19 // pred_check_branch
        %241 = sbr.rel (%p239) target = $region24
      $region23: #{graph_layer_forward.1} parent=19 // pred_region
        %s242 = smul.u32 16, %s14
        %p243 = scmp.lt.s32.totalorder %s242, 63
        %s244 = scalar_select %p243, %s242, 63
        %s245 = smul.addr %s244, 4
        %s246 = smul.addr %s245, 4
        %s247 = scalar_lea.vmem %s0, %s246
        %s248 = smul.u32 16, %s14
      $region24: #{graph_layer_forward.1} parent=19 // pred_fallthru
        _
      // Predicated region
      $region25: #{graph_layer_forward.1} parent=19 // pred_check
        %p249 = pneg %p81
      $region26: #{graph_layer_forward.1} parent=19 // pred_check_branch
        %251 = sbr.rel (%p249) target = $region28
      $region27: #{graph_layer_forward.1} parent=19 // pred_region
        %s252 = smul.u32 16, %s14
        %p253 = scmp.lt.s32.totalorder %s252, 63
        %s254 = scalar_select %p253, %s252, 63
        %s255 = smul.addr %s254, 8
        %s256 = scalar_lea.vmem %s2, %s255
        %s257 = smul.u32 16, %s14
      $region28: #{graph_layer_forward.1} parent=19 // pred_fallthru
        _
      // Predicated region
      $region29: #{graph_layer_forward.1} parent=19 // pred_check
        %p258 = pneg %p107
      $region30: #{graph_layer_forward.1} parent=19 // pred_check_branch
        %260 = sbr.rel (%p258) target = $region32
      $region31: #{graph_layer_forward.1} parent=19 // pred_region
        %s261 = smul.u32 16, %s14
        %p262 = scmp.lt.s32.totalorder %s261, 63
        %s263 = scalar_select %p262, %s261, 63
        %s264 = smul.addr %s263, 8
        %s265 = scalar_lea.vmem %s3, %s264
        %s266 = smul.u32 16, %s14
      $region32: #{graph_layer_forward.1} parent=19 // pred_fallthru
        _
      // Predicated region
      $region33: #{graph_layer_forward.1} parent=19 // pred_check
        %p267 = pneg %p133
      $region34: #{graph_layer_forward.1} parent=19 // pred_check_branch
        %269 = sbr.rel (%p267) target = $region36
      $region35: #{graph_layer_forward.1} parent=19 // pred_region
        %s270 = smul.u32 16, %s14
        %p271 = scmp.lt.s32.totalorder %s270, 63
        %s272 = scalar_select %p271, %s270, 63
        %s273 = smul.addr %s272, 8
        %s274 = scalar_lea.vmem %s4, %s273
        %s275 = smul.u32 16, %s14
      $region36: #{graph_layer_forward.1} parent=19 // pred_fallthru
        _
      // Predicated region
      $region37: #{graph_layer_forward.1} parent=19 // pred_check
        %p276 = pneg %p159
      $region38: #{graph_layer_forward.1} parent=19 // pred_check_branch
        %278 = sbr.rel (%p276) target = $region40
      $region39: #{graph_layer_forward.1} parent=19 // pred_region
        %s279 = smul.u32 16, %s14
        %p280 = scmp.lt.s32.totalorder %s279, 63
        %s281 = scalar_select %p280, %s279, 63
        %s282 = smul.addr %s281, 8
        %s283 = scalar_lea.vmem %s5, %s282
        %s284 = smul.u32 16, %s14
      $region40: #{graph_layer_forward.1} parent=19 // pred_fallthru
        _
    $region20: #{graph_layer_forward.1} parent=5 // pred_fallthru
      _
    %p285 = scmp.le.s32.totalorder 1, %s14
    %p286 = scmp.lt.s32.totalorder %s14, 5
    %p287 = pnand %p285, %p286
    %p288 = pneg %p287
    // Predicated region
    $region41: #{graph_layer_forward.1} parent=5 // pred_check
      _
    $region42: #{graph_layer_forward.1} parent=5 // pred_check_branch
      %290 = sbr.rel (%p287) target = $region44
    $region43: #{graph_layer_forward.1} parent=5 // pred_region
      %s291 = ssub.s32 %s14, 1
      %s292 = smul.u32 16, %s19
      %p293 = scmp.lt.s32.totalorder %s292, 63
      %s294 = scalar_select %p293, %s292, 63
      %s295 = smul.addr %s294, 4
      %s296 = smul.addr %s295, 4
      %s297 = scalar_lea.vmem %s0, %s296
      %p298 = pneg %p40
      %p299 = pneg %p37
      %p300 = pneg %p61
      %p301 = pneg %p58
      %s302 = smul.u32 16, %s19
      %p303 = scmp.lt.s32.totalorder %s302, 63
      %s304 = scalar_select %p303, %s302, 63
      %s305 = smul.addr %s304, 8
      %s306 = scalar_lea.vmem %s2, %s305
      %p307 = pneg %p87
      %p308 = pneg %p84
      %s309 = smul.u32 16, %s19
      %p310 = scmp.lt.s32.totalorder %s309, 63
      %s311 = scalar_select %p310, %s309, 63
      %s312 = smul.addr %s311, 8
      %s313 = scalar_lea.vmem %s3, %s312
      %p314 = pneg %p113
      %p315 = pneg %p110
      %s316 = smul.u32 16, %s19
      %p317 = scmp.lt.s32.totalorder %s316, 63
      %s318 = scalar_select %p317, %s316, 63
      %s319 = smul.addr %s318, 8
      %s320 = scalar_lea.vmem %s4, %s319
      %p321 = pneg %p139
      %p322 = pneg %p136
      %s323 = smul.u32 16, %s19
      %p324 = scmp.lt.s32.totalorder %s323, 63
      %s325 = scalar_select %p324, %s323, 63
      %s326 = smul.addr %s325, 8
      %s327 = scalar_lea.vmem %s5, %s326
      %p328 = pneg %p165
      %p329 = pneg %p162
      %p330 = pneg %p191
      %p331 = pneg %p188
      %s332 = smul.u32 16, %s19
      %p333 = scmp.lt.s32.totalorder %s332, 63
      %s334 = scalar_select %p333, %s332, 63
      %s335 = smul.addr %s334, 8
      %s336 = scalar_lea.vmem %s6, %s335
      %p337 = pneg %p217
      %p338 = pneg %p214
      %s339 = smul.u32 16, %s19
      %p340 = scmp.lt.s32.totalorder %s339, 63
      %s341 = scalar_select %p340, %s339, 63
      %s342 = smul.addr %s341, 8
      %s343 = scalar_lea.vmem %s7, %s342
      %s344 = smul.u32 16, %s19
      %p345 = scmp.lt.s32.totalorder %s344, 63
      %s346 = scalar_select %p345, %s344, 63
      %s347 = smul.addr %s346, 4
      %s348 = smul.addr %s347, 4
      %s349 = scalar_lea.vmem %s0, %s348
      %s350 = smul.u32 16, %s19
      %s351 = smul.u32 16, %s19
      %p352 = scmp.lt.s32.totalorder %s351, 63
      %s353 = scalar_select %p352, %s351, 63
      %s354 = smul.addr %s353, 8
      %s355 = scalar_lea.vmem %s2, %s354
      %s356 = smul.u32 16, %s19
      %s357 = smul.u32 16, %s19
      %p358 = scmp.lt.s32.totalorder %s357, 63
      %s359 = scalar_select %p358, %s357, 63
      %s360 = smul.addr %s359, 8
      %s361 = scalar_lea.vmem %s3, %s360
      %s362 = smul.u32 16, %s19
      %s363 = smul.u32 16, %s19
      %p364 = scmp.lt.s32.totalorder %s363, 63
      %s365 = scalar_select %p364, %s363, 63
      %s366 = smul.addr %s365, 8
      %s367 = scalar_lea.vmem %s4, %s366
      %s368 = smul.u32 16, %s19
      %s369 = smul.u32 16, %s19
      %p370 = scmp.lt.s32.totalorder %s369, 63
      %s371 = scalar_select %p370, %s369, 63
      %s372 = smul.addr %s371, 8
      %s373 = scalar_lea.vmem %s5, %s372
      %s374 = smul.u32 16, %s19
      %s375 = smul.u32 16, %s19
      %p376 = scmp.lt.s32.totalorder %s375, 63
      %s377 = scalar_select %p376, %s375, 63
      %s378 = smul.addr %s377, 8
      %s379 = scalar_lea.vmem %s6, %s378
      %s380 = smul.u32 16, %s19
      %s381 = smul.u32 16, %s19
      %p382 = scmp.lt.s32.totalorder %s381, 63
      %s383 = scalar_select %p382, %s381, 63
      %s384 = smul.addr %s383, 8
      %s385 = scalar_lea.vmem %s7, %s384
      %s386 = smul.u32 16, %s19
      %v387 = vld [vmem:[%s349] sm:$0xff]
      %v388 = vld [vmem:[%s349 + $0x8] sm:$0xff]
      %v389 = vld [vmem:[%s349 + $0x10] sm:$0xff]
      %v390 = vld [vmem:[%s349 + $0x18] sm:$0xff]
      %v391 = vld [vmem:[%s349 + $0x20] sm:$0xff]
      %v392 = vld [vmem:[%s349 + $0x28] sm:$0xff]
      %v393 = vld [vmem:[%s349 + $0x30] sm:$0xff]
      %v394 = vld [vmem:[%s349 + $0x38] sm:$0xff]
      %v395 = vld [vmem:[%s349 + $0x40] sm:$0xff]
      %v396 = vld [vmem:[%s349 + $0x48] sm:$0xff]
      %v397 = vld [vmem:[%s349 + $0x50] sm:$0xff]
      %v398 = vld [vmem:[%s349 + $0x58] sm:$0xff]
      %v399 = vld [vmem:[%s349 + $0x60] sm:$0xff]
      %v400 = vld [vmem:[%s349 + $0x68] sm:$0xff]
      %v401 = vld [vmem:[%s349 + $0x70] sm:$0xff]
      %v402 = vld [vmem:[%s349 + $0x78] sm:$0xff]
      %v403 = vld [vmem:[%s349 + $0x80] sm:$0xff]
      %v404 = vld [vmem:[%s349 + $0x88] sm:$0xff]
      %v405 = vld [vmem:[%s349 + $0x90] sm:$0xff]
      %v406 = vld [vmem:[%s349 + $0x98] sm:$0xff]
      %v407 = vld [vmem:[%s349 + $0xa0] sm:$0xff]
      %v408 = vld [vmem:[%s349 + $0xa8] sm:$0xff]
      %v409 = vld [vmem:[%s349 + $0xb0] sm:$0xff]
      %v410 = vld [vmem:[%s349 + $0xb8] sm:$0xff]
      %v411 = vld [vmem:[%s349 + $0xc0] sm:$0xff]
      %v412 = vld [vmem:[%s349 + $0xc8] sm:$0xff]
      %v413 = vld [vmem:[%s349 + $0xd0] sm:$0xff]
      %v414 = vld [vmem:[%s349 + $0xd8] sm:$0xff]
      %v415 = vld [vmem:[%s349 + $0xe0] sm:$0xff]
      %v416 = vld [vmem:[%s349 + $0xe8] sm:$0xff]
      %v417 = vld [vmem:[%s349 + $0xf0] sm:$0xff]
      %v418 = vld [vmem:[%s349 + $0xf8] sm:$0xff]
      %v419 = vld [vmem:[%s1] sm:$0xf]
      %v420 = vld [vmem:[%s1 + $0x4] sm:$0xf]
      %v421 = vld [vmem:[%s1 + $0x8] sm:$0xf]
      %v422 = vld [vmem:[%s1 + $0xc] sm:$0xf]
      %v423 = vld [vmem:[%s1 + $0x10] sm:$0xf]
      %v424 = vld [vmem:[%s1 + $0x14] sm:$0xf]
      %v425 = vld [vmem:[%s1 + $0x18] sm:$0xf]
      %v426 = vld [vmem:[%s1 + $0x1c] sm:$0xf]
      %v427 = vld [vmem:[%s1 + $0x20] sm:$0xf]
      %v428 = vld [vmem:[%s1 + $0x24] sm:$0xf]
      %v429 = vld [vmem:[%s1 + $0x28] sm:$0xf]
      %v430 = vld [vmem:[%s1 + $0x2c] sm:$0xf]
      %v431 = vld [vmem:[%s1 + $0x30] sm:$0xf]
      %v432 = vld [vmem:[%s1 + $0x34] sm:$0xf]
      %v433 = vld [vmem:[%s1 + $0x38] sm:$0xf]
      %v434 = vld [vmem:[%s1 + $0x3c] sm:$0xf]
      %v435 = vld [vmem:[%s1 + $0x40] sm:$0xf]
      %v436 = vld [vmem:[%s1 + $0x44] sm:$0xf]
      %v437 = vld [vmem:[%s1 + $0x48] sm:$0xf]
      %v438 = vld [vmem:[%s1 + $0x4c] sm:$0xf]
      %v439 = vld [vmem:[%s1 + $0x50] sm:$0xf]
      %v440 = vld [vmem:[%s1 + $0x54] sm:$0xf]
      %v441 = vld [vmem:[%s1 + $0x58] sm:$0xf]
      %v442 = vld [vmem:[%s1 + $0x5c] sm:$0xf]
      %v443 = vld [vmem:[%s1 + $0x60] sm:$0xf]
      %v444 = vld [vmem:[%s1 + $0x64] sm:$0xf]
      %v445 = vld [vmem:[%s1 + $0x68] sm:$0xf]
      %v446 = vld [vmem:[%s1 + $0x6c] sm:$0xf]
      %v447 = vld [vmem:[%s1 + $0x70] sm:$0xf]
      %v448 = vld [vmem:[%s1 + $0x74] sm:$0xf]
      %v449 = vld [vmem:[%s1 + $0x78] sm:$0xf]
      %v450 = vld [vmem:[%s1 + $0x7c] sm:$0xf]
      %v451 = vld [vmem:[%s1 + $0x80] sm:$0xf]
      %v452 = vld [vmem:[%s1 + $0x84] sm:$0xf]
      %v453 = vld [vmem:[%s1 + $0x88] sm:$0xf]
      %v454 = vld [vmem:[%s1 + $0x8c] sm:$0xf]
      %v455 = vld [vmem:[%s1 + $0x90] sm:$0xf]
      %v456 = vld [vmem:[%s1 + $0x94] sm:$0xf]
      %v457 = vld [vmem:[%s1 + $0x98] sm:$0xf]
      %v458 = vld [vmem:[%s1 + $0x9c] sm:$0xf]
      %v459 = vld [vmem:[%s1 + $0xa0] sm:$0xf]
      %v460 = vld [vmem:[%s1 + $0xa4] sm:$0xf]
      %v461 = vld [vmem:[%s1 + $0xa8] sm:$0xf]
      %v462 = vld [vmem:[%s1 + $0xac] sm:$0xf]
      %v463 = vld [vmem:[%s1 + $0xb0] sm:$0xf]
      %v464 = vld [vmem:[%s1 + $0xb4] sm:$0xf]
      %v465 = vld [vmem:[%s1 + $0xb8] sm:$0xf]
      %v466 = vld [vmem:[%s1 + $0xbc] sm:$0xf]
      %v467 = vld [vmem:[%s1 + $0xc0] sm:$0xf]
      %v468 = vld [vmem:[%s1 + $0xc4] sm:$0xf]
      %v469 = vld [vmem:[%s1 + $0xc8] sm:$0xf]
      %v470 = vld [vmem:[%s1 + $0xcc] sm:$0xf]
      %v471 = vld [vmem:[%s1 + $0xd0] sm:$0xf]
      %v472 = vld [vmem:[%s1 + $0xd4] sm:$0xf]
      %v473 = vld [vmem:[%s1 + $0xd8] sm:$0xf]
      %v474 = vld [vmem:[%s1 + $0xdc] sm:$0xf]
      %v475 = vld [vmem:[%s1 + $0xe0] sm:$0xf]
      %v476 = vld [vmem:[%s1 + $0xe4] sm:$0xf]
      %v477 = vld [vmem:[%s1 + $0xe8] sm:$0xf]
      %v478 = vld [vmem:[%s1 + $0xec] sm:$0xf]
      %v479 = vld [vmem:[%s1 + $0xf0] sm:$0xf]
      %v480 = vld [vmem:[%s1 + $0xf4] sm:$0xf]
      %v481 = vld [vmem:[%s1 + $0xf8] sm:$0xf]
      %v482 = vld [vmem:[%s1 + $0xfc] sm:$0xf]
      %v515 = vunpack.c.l.b16 %v387
      %v516 = vunpack.c.h.b16 %v387
      %v517 = vunpack.c.l.b16 %v388
      %v518 = vunpack.c.h.b16 %v388
      %v519 = vunpack.c.l.b16 %v389
      %v520 = vunpack.c.h.b16 %v389
      %v521 = vunpack.c.l.b16 %v390
      %v522 = vunpack.c.h.b16 %v390
      %v523 = vunpack.c.l.b16 %v391
      %v524 = vunpack.c.h.b16 %v391
      %v525 = vunpack.c.l.b16 %v392
      %v526 = vunpack.c.h.b16 %v392
      %v527 = vunpack.c.l.b16 %v393
      %v528 = vunpack.c.h.b16 %v393
      %v529 = vunpack.c.l.b16 %v394
      %v530 = vunpack.c.h.b16 %v394
      %v531 = vunpack.c.l.b16 %v395
      %v532 = vunpack.c.h.b16 %v395
      %v533 = vunpack.c.l.b16 %v396
      %v534 = vunpack.c.h.b16 %v396
      %v535 = vunpack.c.l.b16 %v397
      %v536 = vunpack.c.h.b16 %v397
      %v537 = vunpack.c.l.b16 %v398
      %v538 = vunpack.c.h.b16 %v398
      %v539 = vunpack.c.l.b16 %v399
      %v540 = vunpack.c.h.b16 %v399
      %v541 = vunpack.c.l.b16 %v400
      %v542 = vunpack.c.h.b16 %v400
      %v543 = vunpack.c.l.b16 %v401
      %v544 = vunpack.c.h.b16 %v401
      %v545 = vunpack.c.l.b16 %v402
      %v546 = vunpack.c.h.b16 %v402
      %v547 = vunpack.c.l.b16 %v403
      %v548 = vunpack.c.h.b16 %v403
      %v549 = vunpack.c.l.b16 %v404
      %v550 = vunpack.c.h.b16 %v404
      %v551 = vunpack.c.l.b16 %v405
      %v552 = vunpack.c.h.b16 %v405
      %v553 = vunpack.c.l.b16 %v406
      %v554 = vunpack.c.h.b16 %v406
      %v555 = vunpack.c.l.b16 %v407
      %v556 = vunpack.c.h.b16 %v407
      %v557 = vunpack.c.l.b16 %v408
      %v558 = vunpack.c.h.b16 %v408
      %v559 = vunpack.c.l.b16 %v409
      %v560 = vunpack.c.h.b16 %v409
      %v561 = vunpack.c.l.b16 %v410
      %v562 = vunpack.c.h.b16 %v410
      %v563 = vunpack.c.l.b16 %v411
      %v564 = vunpack.c.h.b16 %v411
      %v565 = vunpack.c.l.b16 %v412
      %v566 = vunpack.c.h.b16 %v412
      %v567 = vunpack.c.l.b16 %v413
      %v568 = vunpack.c.h.b16 %v413
      %v569 = vunpack.c.l.b16 %v414
      %v570 = vunpack.c.h.b16 %v414
      %v571 = vunpack.c.l.b16 %v415
      %v572 = vunpack.c.h.b16 %v415
      %v573 = vunpack.c.l.b16 %v416
      %v574 = vunpack.c.h.b16 %v416
      %v575 = vunpack.c.l.b16 %v417
      %v576 = vunpack.c.h.b16 %v417
      %v577 = vunpack.c.l.b16 %v418
      %v578 = vunpack.c.h.b16 %v418
      %v579 = vpack.c.b16 %v519, %v515
      %v580 = vpack.c.b16 %v520, %v516
      %v581 = vpack.c.b16 %v521, %v517
      %v582 = vpack.c.b16 %v522, %v518
      %v583 = vpack.c.b16 %v527, %v523
      %v584 = vpack.c.b16 %v528, %v524
      %v585 = vpack.c.b16 %v529, %v525
      %v586 = vpack.c.b16 %v530, %v526
      %v587 = vpack.c.b16 %v535, %v531
      %v588 = vpack.c.b16 %v536, %v532
      %v589 = vpack.c.b16 %v537, %v533
      %v590 = vpack.c.b16 %v538, %v534
      %v591 = vpack.c.b16 %v543, %v539
      %v592 = vpack.c.b16 %v544, %v540
      %v593 = vpack.c.b16 %v545, %v541
      %v594 = vpack.c.b16 %v546, %v542
      %v595 = vpack.c.b16 %v551, %v547
      %v596 = vpack.c.b16 %v552, %v548
      %v597 = vpack.c.b16 %v553, %v549
      %v598 = vpack.c.b16 %v554, %v550
      %v599 = vpack.c.b16 %v559, %v555
      %v600 = vpack.c.b16 %v560, %v556
      %v601 = vpack.c.b16 %v561, %v557
      %v602 = vpack.c.b16 %v562, %v558
      %v603 = vpack.c.b16 %v567, %v563
      %v604 = vpack.c.b16 %v568, %v564
      %v605 = vpack.c.b16 %v569, %v565
      %v606 = vpack.c.b16 %v570, %v566
      %v607 = vpack.c.b16 %v575, %v571
      %v608 = vpack.c.b16 %v576, %v572
      %v609 = vpack.c.b16 %v577, %v573
      %v610 = vpack.c.b16 %v578, %v574
      %v707 = vunpack.c.l.b16 %v419
      %v708 = vunpack.c.l.b16 %v420
      %v709 = vunpack.c.l.b16 %v421
      %v710 = vunpack.c.l.b16 %v422
      %v711 = vunpack.c.l.b16 %v423
      %v712 = vunpack.c.l.b16 %v424
      %v713 = vunpack.c.l.b16 %v425
      %v714 = vunpack.c.l.b16 %v426
      %v715 = vunpack.c.l.b16 %v427
      %v716 = vunpack.c.l.b16 %v428
      %v717 = vunpack.c.l.b16 %v429
      %v718 = vunpack.c.l.b16 %v430
      %v719 = vunpack.c.l.b16 %v431
      %v720 = vunpack.c.l.b16 %v432
      %v721 = vunpack.c.l.b16 %v433
      %v722 = vunpack.c.l.b16 %v434
      %v723 = vunpack.c.l.b16 %v435
      %v724 = vunpack.c.l.b16 %v436
      %v725 = vunpack.c.l.b16 %v437
      %v726 = vunpack.c.l.b16 %v438
      %v727 = vunpack.c.l.b16 %v439
      %v728 = vunpack.c.l.b16 %v440
      %v729 = vunpack.c.l.b16 %v441
      %v730 = vunpack.c.l.b16 %v442
      %v731 = vunpack.c.l.b16 %v443
      %v732 = vunpack.c.l.b16 %v444
      %v733 = vunpack.c.l.b16 %v445
      %v734 = vunpack.c.l.b16 %v446
      %v735 = vunpack.c.l.b16 %v447
      %v736 = vunpack.c.l.b16 %v448
      %v737 = vunpack.c.l.b16 %v449
      %v738 = vunpack.c.l.b16 %v450
      %v739 = vunpack.c.l.b16 %v451
      %v740 = vunpack.c.l.b16 %v452
      %v741 = vunpack.c.l.b16 %v453
      %v742 = vunpack.c.l.b16 %v454
      %v743 = vunpack.c.l.b16 %v455
      %v744 = vunpack.c.l.b16 %v456
      %v745 = vunpack.c.l.b16 %v457
      %v746 = vunpack.c.l.b16 %v458
      %v747 = vunpack.c.l.b16 %v459
      %v748 = vunpack.c.l.b16 %v460
      %v749 = vunpack.c.l.b16 %v461
      %v750 = vunpack.c.l.b16 %v462
      %v751 = vunpack.c.l.b16 %v463
      %v752 = vunpack.c.l.b16 %v464
      %v753 = vunpack.c.l.b16 %v465
      %v754 = vunpack.c.l.b16 %v466
      %v755 = vunpack.c.l.b16 %v467
      %v756 = vunpack.c.l.b16 %v468
      %v757 = vunpack.c.l.b16 %v469
      %v758 = vunpack.c.l.b16 %v470
      %v759 = vunpack.c.l.b16 %v471
      %v760 = vunpack.c.l.b16 %v472
      %v761 = vunpack.c.l.b16 %v473
      %v762 = vunpack.c.l.b16 %v474
      %v763 = vunpack.c.l.b16 %v475
      %v764 = vunpack.c.l.b16 %v476
      %v765 = vunpack.c.l.b16 %v477
      %v766 = vunpack.c.l.b16 %v478
      %v767 = vunpack.c.l.b16 %v479
      %v768 = vunpack.c.l.b16 %v480
      %v769 = vunpack.c.l.b16 %v481
      %v770 = vunpack.c.l.b16 %v482
      %v771 = vpack.c.b16 %v708, %v707
      %v772 = vpack.c.b16 %v710, %v709
      %v773 = vpack.c.b16 %v712, %v711
      %v774 = vpack.c.b16 %v714, %v713
      %v775 = vpack.c.b16 %v716, %v715
      %v776 = vpack.c.b16 %v718, %v717
      %v777 = vpack.c.b16 %v720, %v719
      %v778 = vpack.c.b16 %v722, %v721
      %v779 = vpack.c.b16 %v724, %v723
      %v780 = vpack.c.b16 %v726, %v725
      %v781 = vpack.c.b16 %v728, %v727
      %v782 = vpack.c.b16 %v730, %v729
      %v783 = vpack.c.b16 %v732, %v731
      %v784 = vpack.c.b16 %v734, %v733
      %v785 = vpack.c.b16 %v736, %v735
      %v786 = vpack.c.b16 %v738, %v737
      %v787 = vpack.c.b16 %v740, %v739
      %v788 = vpack.c.b16 %v742, %v741
      %v789 = vpack.c.b16 %v744, %v743
      %v790 = vpack.c.b16 %v746, %v745
      %v791 = vpack.c.b16 %v748, %v747
      %v792 = vpack.c.b16 %v750, %v749
      %v793 = vpack.c.b16 %v752, %v751
      %v794 = vpack.c.b16 %v754, %v753
      %v795 = vpack.c.b16 %v756, %v755
      %v796 = vpack.c.b16 %v758, %v757
      %v797 = vpack.c.b16 %v760, %v759
      %v798 = vpack.c.b16 %v762, %v761
      %v799 = vpack.c.b16 %v764, %v763
      %v800 = vpack.c.b16 %v766, %v765
      %v801 = vpack.c.b16 %v768, %v767
      %v802 = vpack.c.b16 %v770, %v769
      %835 = vmatpush.bf16.msra.mxu0 %v778
      %836 = vmatpush.bf16.msra.mxu0 %v777
      %837 = vmatpush.bf16.msra.mxu0 %v776
      %838 = vmatpush.bf16.msra.mxu0 %v775
      %839 = vmatpush.bf16.msra.mxu0 %v774
      %840 = vmatpush.bf16.msra.mxu0 %v773
      %841 = vmatpush.bf16.msra.mxu0 %v772
      %842 = vmatpush.bf16.msra.mxu0 %v771
      %843 = vmatmul.bf16.gmra.mxu0 %v579
      %v844 = vpop.f32.mrf.mxu0
      %v845 = vadd.f32 0.0, %v844
      %v846 = vpop.f32.mrf.mxu0
      %v847 = vadd.f32 0.0, %v846
      %848 = vmatmul.bf16.gmra.mxu0 %v583
      %v849 = vpop.f32.mrf.mxu0
      %v850 = vadd.f32 0.0, %v849
      %v851 = vpop.f32.mrf.mxu0
      %v852 = vadd.f32 0.0, %v851
      %853 = vmatmul.bf16.gmra.mxu0 %v587
      %v854 = vpop.f32.mrf.mxu0
      %v855 = vadd.f32 0.0, %v854
      %v856 = vpop.f32.mrf.mxu0
      %v857 = vadd.f32 0.0, %v856
      %858 = vmatmul.bf16.gmra.mxu0 %v591
      %v859 = vpop.f32.mrf.mxu0
      %v860 = vadd.f32 0.0, %v859
      %v861 = vpop.f32.mrf.mxu0
      %v862 = vadd.f32 0.0, %v861
      %863 = vmatmul.bf16.gmra.mxu0 %v595
      %v864 = vpop.f32.mrf.mxu0
      %v865 = vadd.f32 0.0, %v864
      %v866 = vpop.f32.mrf.mxu0
      %v867 = vadd.f32 0.0, %v866
      %868 = vmatmul.bf16.gmra.mxu0 %v599
      %v869 = vpop.f32.mrf.mxu0
      %v870 = vadd.f32 0.0, %v869
      %v871 = vpop.f32.mrf.mxu0
      %v872 = vadd.f32 0.0, %v871
      %873 = vmatmul.bf16.gmra.mxu0 %v603
      %v874 = vpop.f32.mrf.mxu0
      %v875 = vadd.f32 0.0, %v874
      %v876 = vpop.f32.mrf.mxu0
      %v877 = vadd.f32 0.0, %v876
      %878 = vmatmul.bf16.gmra.mxu0 %v607
      %v879 = vpop.f32.mrf.mxu0
      %v880 = vadd.f32 0.0, %v879
      %v881 = vpop.f32.mrf.mxu0
      %v882 = vadd.f32 0.0, %v881
      %883 = vdwg.mxu0
      %884 = vmatpush.bf16.msra.mxu0 %v786
      %885 = vmatpush.bf16.msra.mxu0 %v785
      %886 = vmatpush.bf16.msra.mxu0 %v784
      %887 = vmatpush.bf16.msra.mxu0 %v783
      %888 = vmatpush.bf16.msra.mxu0 %v782
      %889 = vmatpush.bf16.msra.mxu0 %v781
      %890 = vmatpush.bf16.msra.mxu0 %v780
      %891 = vmatpush.bf16.msra.mxu0 %v779
      %892 = vmatmul.bf16.gmra.mxu0 %v580
      %v893 = vpop.f32.mrf.mxu0
      %v894 = vadd.f32 %v845, %v893
      %v895 = vpop.f32.mrf.mxu0
      %v896 = vadd.f32 %v847, %v895
      %897 = vmatmul.bf16.gmra.mxu0 %v584
      %v898 = vpop.f32.mrf.mxu0
      %v899 = vadd.f32 %v850, %v898
      %v900 = vpop.f32.mrf.mxu0
      %v901 = vadd.f32 %v852, %v900
      %902 = vmatmul.bf16.gmra.mxu0 %v588
      %v903 = vpop.f32.mrf.mxu0
      %v904 = vadd.f32 %v855, %v903
      %v905 = vpop.f32.mrf.mxu0
      %v906 = vadd.f32 %v857, %v905
      %907 = vmatmul.bf16.gmra.mxu0 %v592
      %v908 = vpop.f32.mrf.mxu0
      %v909 = vadd.f32 %v860, %v908
      %v910 = vpop.f32.mrf.mxu0
      %v911 = vadd.f32 %v862, %v910
      %912 = vmatmul.bf16.gmra.mxu0 %v596
      %v913 = vpop.f32.mrf.mxu0
      %v914 = vadd.f32 %v865, %v913
      %v915 = vpop.f32.mrf.mxu0
      %v916 = vadd.f32 %v867, %v915
      %917 = vmatmul.bf16.gmra.mxu0 %v600
      %v918 = vpop.f32.mrf.mxu0
      %v919 = vadd.f32 %v870, %v918
      %v920 = vpop.f32.mrf.mxu0
      %v921 = vadd.f32 %v872, %v920
      %922 = vmatmul.bf16.gmra.mxu0 %v604
      %v923 = vpop.f32.mrf.mxu0
      %v924 = vadd.f32 %v875, %v923
      %v925 = vpop.f32.mrf.mxu0
      %v926 = vadd.f32 %v877, %v925
      %927 = vmatmul.bf16.gmra.mxu0 %v608
      %v928 = vpop.f32.mrf.mxu0
      %v929 = vadd.f32 %v880, %v928
      %v930 = vpop.f32.mrf.mxu0
      %v931 = vadd.f32 %v882, %v930
      %932 = vdwg.mxu0
      %933 = vmatpush.bf16.msra.mxu0 %v794
      %934 = vmatpush.bf16.msra.mxu0 %v793
      %935 = vmatpush.bf16.msra.mxu0 %v792
      %936 = vmatpush.bf16.msra.mxu0 %v791
      %937 = vmatpush.bf16.msra.mxu0 %v790
      %938 = vmatpush.bf16.msra.mxu0 %v789
      %939 = vmatpush.bf16.msra.mxu0 %v788
      %940 = vmatpush.bf16.msra.mxu0 %v787
      %941 = vmatmul.bf16.gmra.mxu0 %v581
      %v942 = vpop.f32.mrf.mxu0
      %v943 = vadd.f32 %v894, %v942
      %v944 = vpop.f32.mrf.mxu0
      %v945 = vadd.f32 %v896, %v944
      %946 = vmatmul.bf16.gmra.mxu0 %v585
      %v947 = vpop.f32.mrf.mxu0
      %v948 = vadd.f32 %v899, %v947
      %v949 = vpop.f32.mrf.mxu0
      %v950 = vadd.f32 %v901, %v949
      %951 = vmatmul.bf16.gmra.mxu0 %v589
      %v952 = vpop.f32.mrf.mxu0
      %v953 = vadd.f32 %v904, %v952
      %v954 = vpop.f32.mrf.mxu0
      %v955 = vadd.f32 %v906, %v954
      %956 = vmatmul.bf16.gmra.mxu0 %v593
      %v957 = vpop.f32.mrf.mxu0
      %v958 = vadd.f32 %v909, %v957
      %v959 = vpop.f32.mrf.mxu0
      %v960 = vadd.f32 %v911, %v959
      %961 = vmatmul.bf16.gmra.mxu0 %v597
      %v962 = vpop.f32.mrf.mxu0
      %v963 = vadd.f32 %v914, %v962
      %v964 = vpop.f32.mrf.mxu0
      %v965 = vadd.f32 %v916, %v964
      %966 = vmatmul.bf16.gmra.mxu0 %v601
      %v967 = vpop.f32.mrf.mxu0
      %v968 = vadd.f32 %v919, %v967
      %v969 = vpop.f32.mrf.mxu0
      %v970 = vadd.f32 %v921, %v969
      %971 = vmatmul.bf16.gmra.mxu0 %v605
      %v972 = vpop.f32.mrf.mxu0
      %v973 = vadd.f32 %v924, %v972
      %v974 = vpop.f32.mrf.mxu0
      %v975 = vadd.f32 %v926, %v974
      %976 = vmatmul.bf16.gmra.mxu0 %v609
      %v977 = vpop.f32.mrf.mxu0
      %v978 = vadd.f32 %v929, %v977
      %v979 = vpop.f32.mrf.mxu0
      %v980 = vadd.f32 %v931, %v979
      %981 = vdwg.mxu0
      %982 = vmatpush.bf16.msra.mxu0 %v802
      %983 = vmatpush.bf16.msra.mxu0 %v801
      %984 = vmatpush.bf16.msra.mxu0 %v800
      %985 = vmatpush.bf16.msra.mxu0 %v799
      %986 = vmatpush.bf16.msra.mxu0 %v798
      %987 = vmatpush.bf16.msra.mxu0 %v797
      %988 = vmatpush.bf16.msra.mxu0 %v796
      %989 = vmatpush.bf16.msra.mxu0 %v795
      %990 = vmatmul.bf16.gmra.mxu0 %v582
      %v991 = vpop.f32.mrf.mxu0
      %v992 = vadd.f32 %v943, %v991
      %v993 = vpop.f32.mrf.mxu0
      %v994 = vadd.f32 %v945, %v993
      %995 = vmatmul.bf16.gmra.mxu0 %v586
      %v996 = vpop.f32.mrf.mxu0
      %v997 = vadd.f32 %v948, %v996
      %v998 = vpop.f32.mrf.mxu0
      %v999 = vadd.f32 %v950, %v998
      %1000 = vmatmul.bf16.gmra.mxu0 %v590
      %v1001 = vpop.f32.mrf.mxu0
      %v1002 = vadd.f32 %v953, %v1001
      %v1003 = vpop.f32.mrf.mxu0
      %v1004 = vadd.f32 %v955, %v1003
      %1005 = vmatmul.bf16.gmra.mxu0 %v594
      %v1006 = vpop.f32.mrf.mxu0
      %v1007 = vadd.f32 %v958, %v1006
      %v1008 = vpop.f32.mrf.mxu0
      %v1009 = vadd.f32 %v960, %v1008
      %1010 = vmatmul.bf16.gmra.mxu0 %v598
      %v1011 = vpop.f32.mrf.mxu0
      %v1012 = vadd.f32 %v963, %v1011
      %v1013 = vpop.f32.mrf.mxu0
      %v1014 = vadd.f32 %v965, %v1013
      %1015 = vmatmul.bf16.gmra.mxu0 %v602
      %v1016 = vpop.f32.mrf.mxu0
      %v1017 = vadd.f32 %v968, %v1016
      %v1018 = vpop.f32.mrf.mxu0
      %v1019 = vadd.f32 %v970, %v1018
      %1020 = vmatmul.bf16.gmra.mxu0 %v606
      %v1021 = vpop.f32.mrf.mxu0
      %v1022 = vadd.f32 %v973, %v1021
      %v1023 = vpop.f32.mrf.mxu0
      %v1024 = vadd.f32 %v975, %v1023
      %1025 = vmatmul.bf16.gmra.mxu0 %v610
      %v1026 = vpop.f32.mrf.mxu0
      %v1027 = vadd.f32 %v978, %v1026
      %v1028 = vpop.f32.mrf.mxu0
      %v1029 = vadd.f32 %v980, %v1028
      %1030 = vdwg.mxu0
      %v1031 = vld [vmem:[%s367] sm:$0xff]
      %v1032 = vld [vmem:[%s367 + $0x8] sm:$0xff]
      %v1033 = vld [vmem:[%s367 + $0x10] sm:$0xff]
      %v1034 = vld [vmem:[%s367 + $0x18] sm:$0xff]
      %v1035 = vld [vmem:[%s367 + $0x20] sm:$0xff]
      %v1036 = vld [vmem:[%s367 + $0x28] sm:$0xff]
      %v1037 = vld [vmem:[%s367 + $0x30] sm:$0xff]
      %v1038 = vld [vmem:[%s367 + $0x38] sm:$0xff]
      %v1039 = vld [vmem:[%s367 + $0x40] sm:$0xff]
      %v1040 = vld [vmem:[%s367 + $0x48] sm:$0xff]
      %v1041 = vld [vmem:[%s367 + $0x50] sm:$0xff]
      %v1042 = vld [vmem:[%s367 + $0x58] sm:$0xff]
      %v1043 = vld [vmem:[%s367 + $0x60] sm:$0xff]
      %v1044 = vld [vmem:[%s367 + $0x68] sm:$0xff]
      %v1045 = vld [vmem:[%s367 + $0x70] sm:$0xff]
      %v1046 = vld [vmem:[%s367 + $0x78] sm:$0xff]
      %v1047 = vld [vmem:[%s355] sm:$0xff]
      %v1048 = vld [vmem:[%s355 + $0x8] sm:$0xff]
      %v1049 = vld [vmem:[%s355 + $0x10] sm:$0xff]
      %v1050 = vld [vmem:[%s355 + $0x18] sm:$0xff]
      %v1051 = vld [vmem:[%s355 + $0x20] sm:$0xff]
      %v1052 = vld [vmem:[%s355 + $0x28] sm:$0xff]
      %v1053 = vld [vmem:[%s355 + $0x30] sm:$0xff]
      %v1054 = vld [vmem:[%s355 + $0x38] sm:$0xff]
      %v1055 = vld [vmem:[%s355 + $0x40] sm:$0xff]
      %v1056 = vld [vmem:[%s355 + $0x48] sm:$0xff]
      %v1057 = vld [vmem:[%s355 + $0x50] sm:$0xff]
      %v1058 = vld [vmem:[%s355 + $0x58] sm:$0xff]
      %v1059 = vld [vmem:[%s355 + $0x60] sm:$0xff]
      %v1060 = vld [vmem:[%s355 + $0x68] sm:$0xff]
      %v1061 = vld [vmem:[%s355 + $0x70] sm:$0xff]
      %v1062 = vld [vmem:[%s355 + $0x78] sm:$0xff]
      %1064 = vset.pattern.permute.xlu0 0
      %1065 = vperm.xlu0 %1064, %v1047
      %v1066 = vpop.permute.xlu0 %1065
      %1069 = vset.pattern.permute.xlu0 0
      %1070 = vperm.xlu0 %1069, %v1048
      %v1071 = vpop.permute.xlu0 %1070
      %1074 = vset.pattern.permute.xlu0 0
      %1075 = vperm.xlu0 %1074, %v1049
      %v1076 = vpop.permute.xlu0 %1075
      %1079 = vset.pattern.permute.xlu0 0
      %1080 = vperm.xlu0 %1079, %v1050
      %v1081 = vpop.permute.xlu0 %1080
      %1084 = vset.pattern.permute.xlu0 0
      %1085 = vperm.xlu0 %1084, %v1051
      %v1086 = vpop.permute.xlu0 %1085
      %1089 = vset.pattern.permute.xlu0 0
      %1090 = vperm.xlu0 %1089, %v1052
      %v1091 = vpop.permute.xlu0 %1090
      %1094 = vset.pattern.permute.xlu0 0
      %1095 = vperm.xlu0 %1094, %v1053
      %v1096 = vpop.permute.xlu0 %1095
      %1099 = vset.pattern.permute.xlu0 0
      %1100 = vperm.xlu0 %1099, %v1054
      %v1101 = vpop.permute.xlu0 %1100
      %1104 = vset.pattern.permute.xlu0 0
      %1105 = vperm.xlu0 %1104, %v1055
      %v1106 = vpop.permute.xlu0 %1105
      %1109 = vset.pattern.permute.xlu0 0
      %1110 = vperm.xlu0 %1109, %v1056
      %v1111 = vpop.permute.xlu0 %1110
      %1114 = vset.pattern.permute.xlu0 0
      %1115 = vperm.xlu0 %1114, %v1057
      %v1116 = vpop.permute.xlu0 %1115
      %1119 = vset.pattern.permute.xlu0 0
      %1120 = vperm.xlu0 %1119, %v1058
      %v1121 = vpop.permute.xlu0 %1120
      %1124 = vset.pattern.permute.xlu0 0
      %1125 = vperm.xlu0 %1124, %v1059
      %v1126 = vpop.permute.xlu0 %1125
      %1129 = vset.pattern.permute.xlu0 0
      %1130 = vperm.xlu0 %1129, %v1060
      %v1131 = vpop.permute.xlu0 %1130
      %1134 = vset.pattern.permute.xlu0 0
      %1135 = vperm.xlu0 %1134, %v1061
      %v1136 = vpop.permute.xlu0 %1135
      %1139 = vset.pattern.permute.xlu0 0
      %1140 = vperm.xlu0 %1139, %v1062
      %v1141 = vpop.permute.xlu0 %1140
      %v1143 = vmul.f32 %v1066, %v992
      %v1144 = vmul.f32 %v1071, %v994
      %v1145 = vmul.f32 %v1076, %v997
      %v1146 = vmul.f32 %v1081, %v999
      %v1147 = vmul.f32 %v1086, %v1002
      %v1148 = vmul.f32 %v1091, %v1004
      %v1149 = vmul.f32 %v1096, %v1007
      %v1150 = vmul.f32 %v1101, %v1009
      %v1151 = vmul.f32 %v1106, %v1012
      %v1152 = vmul.f32 %v1111, %v1014
      %v1153 = vmul.f32 %v1116, %v1017
      %v1154 = vmul.f32 %v1121, %v1019
      %v1155 = vmul.f32 %v1126, %v1022
      %v1156 = vmul.f32 %v1131, %v1024
      %v1157 = vmul.f32 %v1136, %v1027
      %v1158 = vmul.f32 %v1141, %v1029
      %v1159 = vadd.f32 %v1031, %v1143
      %v1160 = vadd.f32 %v1032, %v1144
      %v1161 = vadd.f32 %v1033, %v1145
      %v1162 = vadd.f32 %v1034, %v1146
      %v1163 = vadd.f32 %v1035, %v1147
      %v1164 = vadd.f32 %v1036, %v1148
      %v1165 = vadd.f32 %v1037, %v1149
      %v1166 = vadd.f32 %v1038, %v1150
      %v1167 = vadd.f32 %v1039, %v1151
      %v1168 = vadd.f32 %v1040, %v1152
      %v1169 = vadd.f32 %v1041, %v1153
      %v1170 = vadd.f32 %v1042, %v1154
      %v1171 = vadd.f32 %v1043, %v1155
      %v1172 = vadd.f32 %v1044, %v1156
      %v1173 = vadd.f32 %v1045, %v1157
      %v1174 = vadd.f32 %v1046, %v1158
      %v1175 = vld [vmem:[%s373] sm:$0xff]
      %v1176 = vld [vmem:[%s373 + $0x8] sm:$0xff]
      %v1177 = vld [vmem:[%s373 + $0x10] sm:$0xff]
      %v1178 = vld [vmem:[%s373 + $0x18] sm:$0xff]
      %v1179 = vld [vmem:[%s373 + $0x20] sm:$0xff]
      %v1180 = vld [vmem:[%s373 + $0x28] sm:$0xff]
      %v1181 = vld [vmem:[%s373 + $0x30] sm:$0xff]
      %v1182 = vld [vmem:[%s373 + $0x38] sm:$0xff]
      %v1183 = vld [vmem:[%s373 + $0x40] sm:$0xff]
      %v1184 = vld [vmem:[%s373 + $0x48] sm:$0xff]
      %v1185 = vld [vmem:[%s373 + $0x50] sm:$0xff]
      %v1186 = vld [vmem:[%s373 + $0x58] sm:$0xff]
      %v1187 = vld [vmem:[%s373 + $0x60] sm:$0xff]
      %v1188 = vld [vmem:[%s373 + $0x68] sm:$0xff]
      %v1189 = vld [vmem:[%s373 + $0x70] sm:$0xff]
      %v1190 = vld [vmem:[%s373 + $0x78] sm:$0xff]
      %v1191 = vld [vmem:[%s361] sm:$0xff]
      %v1192 = vld [vmem:[%s361 + $0x8] sm:$0xff]
      %v1193 = vld [vmem:[%s361 + $0x10] sm:$0xff]
      %v1194 = vld [vmem:[%s361 + $0x18] sm:$0xff]
      %v1195 = vld [vmem:[%s361 + $0x20] sm:$0xff]
      %v1196 = vld [vmem:[%s361 + $0x28] sm:$0xff]
      %v1197 = vld [vmem:[%s361 + $0x30] sm:$0xff]
      %v1198 = vld [vmem:[%s361 + $0x38] sm:$0xff]
      %v1199 = vld [vmem:[%s361 + $0x40] sm:$0xff]
      %v1200 = vld [vmem:[%s361 + $0x48] sm:$0xff]
      %v1201 = vld [vmem:[%s361 + $0x50] sm:$0xff]
      %v1202 = vld [vmem:[%s361 + $0x58] sm:$0xff]
      %v1203 = vld [vmem:[%s361 + $0x60] sm:$0xff]
      %v1204 = vld [vmem:[%s361 + $0x68] sm:$0xff]
      %v1205 = vld [vmem:[%s361 + $0x70] sm:$0xff]
      %v1206 = vld [vmem:[%s361 + $0x78] sm:$0xff]
      %1208 = vset.pattern.permute.xlu0 0
      %1209 = vperm.xlu0 %1208, %v1191
      %v1210 = vpop.permute.xlu0 %1209
      %1213 = vset.pattern.permute.xlu0 0
      %1214 = vperm.xlu0 %1213, %v1192
      %v1215 = vpop.permute.xlu0 %1214
      %1218 = vset.pattern.permute.xlu0 0
      %1219 = vperm.xlu0 %1218, %v1193
      %v1220 = vpop.permute.xlu0 %1219
      %1223 = vset.pattern.permute.xlu0 0
      %1224 = vperm.xlu0 %1223, %v1194
      %v1225 = vpop.permute.xlu0 %1224
      %1228 = vset.pattern.permute.xlu0 0
      %1229 = vperm.xlu0 %1228, %v1195
      %v1230 = vpop.permute.xlu0 %1229
      %1233 = vset.pattern.permute.xlu0 0
      %1234 = vperm.xlu0 %1233, %v1196
      %v1235 = vpop.permute.xlu0 %1234
      %1238 = vset.pattern.permute.xlu0 0
      %1239 = vperm.xlu0 %1238, %v1197
      %v1240 = vpop.permute.xlu0 %1239
      %1243 = vset.pattern.permute.xlu0 0
      %1244 = vperm.xlu0 %1243, %v1198
      %v1245 = vpop.permute.xlu0 %1244
      %1248 = vset.pattern.permute.xlu0 0
      %1249 = vperm.xlu0 %1248, %v1199
      %v1250 = vpop.permute.xlu0 %1249
      %1253 = vset.pattern.permute.xlu0 0
      %1254 = vperm.xlu0 %1253, %v1200
      %v1255 = vpop.permute.xlu0 %1254
      %1258 = vset.pattern.permute.xlu0 0
      %1259 = vperm.xlu0 %1258, %v1201
      %v1260 = vpop.permute.xlu0 %1259
      %1263 = vset.pattern.permute.xlu0 0
      %1264 = vperm.xlu0 %1263, %v1202
      %v1265 = vpop.permute.xlu0 %1264
      %1268 = vset.pattern.permute.xlu0 0
      %1269 = vperm.xlu0 %1268, %v1203
      %v1270 = vpop.permute.xlu0 %1269
      %1273 = vset.pattern.permute.xlu0 0
      %1274 = vperm.xlu0 %1273, %v1204
      %v1275 = vpop.permute.xlu0 %1274
      %1278 = vset.pattern.permute.xlu0 0
      %1279 = vperm.xlu0 %1278, %v1205
      %v1280 = vpop.permute.xlu0 %1279
      %1283 = vset.pattern.permute.xlu0 0
      %1284 = vperm.xlu0 %1283, %v1206
      %v1285 = vpop.permute.xlu0 %1284
      %v1287 = vmul.f32 %v1210, %v992
      %v1288 = vmul.f32 %v1215, %v994
      %v1289 = vmul.f32 %v1220, %v997
      %v1290 = vmul.f32 %v1225, %v999
      %v1291 = vmul.f32 %v1230, %v1002
      %v1292 = vmul.f32 %v1235, %v1004
      %v1293 = vmul.f32 %v1240, %v1007
      %v1294 = vmul.f32 %v1245, %v1009
      %v1295 = vmul.f32 %v1250, %v1012
      %v1296 = vmul.f32 %v1255, %v1014
      %v1297 = vmul.f32 %v1260, %v1017
      %v1298 = vmul.f32 %v1265, %v1019
      %v1299 = vmul.f32 %v1270, %v1022
      %v1300 = vmul.f32 %v1275, %v1024
      %v1301 = vmul.f32 %v1280, %v1027
      %v1302 = vmul.f32 %v1285, %v1029
      %v1303 = vadd.f32 %v1175, %v1287
      %v1304 = vadd.f32 %v1176, %v1288
      %v1305 = vadd.f32 %v1177, %v1289
      %v1306 = vadd.f32 %v1178, %v1290
      %v1307 = vadd.f32 %v1179, %v1291
      %v1308 = vadd.f32 %v1180, %v1292
      %v1309 = vadd.f32 %v1181, %v1293
      %v1310 = vadd.f32 %v1182, %v1294
      %v1311 = vadd.f32 %v1183, %v1295
      %v1312 = vadd.f32 %v1184, %v1296
      %v1313 = vadd.f32 %v1185, %v1297
      %v1314 = vadd.f32 %v1186, %v1298
      %v1315 = vadd.f32 %v1187, %v1299
      %v1316 = vadd.f32 %v1188, %v1300
      %v1317 = vadd.f32 %v1189, %v1301
      %v1318 = vadd.f32 %v1190, %v1302
      %vm1319 = vcmp.gt.f32.partialorder %v1159, 0.0
      %vm1320 = vcmp.gt.f32.partialorder %v1160, 0.0
      %vm1321 = vcmp.gt.f32.partialorder %v1161, 0.0
      %vm1322 = vcmp.gt.f32.partialorder %v1162, 0.0
      %vm1323 = vcmp.gt.f32.partialorder %v1163, 0.0
      %vm1324 = vcmp.gt.f32.partialorder %v1164, 0.0
      %vm1325 = vcmp.gt.f32.partialorder %v1165, 0.0
      %vm1326 = vcmp.gt.f32.partialorder %v1166, 0.0
      %vm1327 = vcmp.gt.f32.partialorder %v1167, 0.0
      %vm1328 = vcmp.gt.f32.partialorder %v1168, 0.0
      %vm1329 = vcmp.gt.f32.partialorder %v1169, 0.0
      %vm1330 = vcmp.gt.f32.partialorder %v1170, 0.0
      %vm1331 = vcmp.gt.f32.partialorder %v1171, 0.0
      %vm1332 = vcmp.gt.f32.partialorder %v1172, 0.0
      %vm1333 = vcmp.gt.f32.partialorder %v1173, 0.0
      %vm1334 = vcmp.gt.f32.partialorder %v1174, 0.0
      %v1335 = vmul.f32 %v1159, 0.01
      %v1336 = vmul.f32 %v1160, 0.01
      %v1337 = vmul.f32 %v1161, 0.01
      %v1338 = vmul.f32 %v1162, 0.01
      %v1339 = vmul.f32 %v1163, 0.01
      %v1340 = vmul.f32 %v1164, 0.01
      %v1341 = vmul.f32 %v1165, 0.01
      %v1342 = vmul.f32 %v1166, 0.01
      %v1343 = vmul.f32 %v1167, 0.01
      %v1344 = vmul.f32 %v1168, 0.01
      %v1345 = vmul.f32 %v1169, 0.01
      %v1346 = vmul.f32 %v1170, 0.01
      %v1347 = vmul.f32 %v1171, 0.01
      %v1348 = vmul.f32 %v1172, 0.01
      %v1349 = vmul.f32 %v1173, 0.01
      %v1350 = vmul.f32 %v1174, 0.01
      %v1351 = vsel %vm1319, %v1159, %v1335
      %v1352 = vsel %vm1320, %v1160, %v1336
      %v1353 = vsel %vm1321, %v1161, %v1337
      %v1354 = vsel %vm1322, %v1162, %v1338
      %v1355 = vsel %vm1323, %v1163, %v1339
      %v1356 = vsel %vm1324, %v1164, %v1340
      %v1357 = vsel %vm1325, %v1165, %v1341
      %v1358 = vsel %vm1326, %v1166, %v1342
      %v1359 = vsel %vm1327, %v1167, %v1343
      %v1360 = vsel %vm1328, %v1168, %v1344
      %v1361 = vsel %vm1329, %v1169, %v1345
      %v1362 = vsel %vm1330, %v1170, %v1346
      %v1363 = vsel %vm1331, %v1171, %v1347
      %v1364 = vsel %vm1332, %v1172, %v1348
      %v1365 = vsel %vm1333, %v1173, %v1349
      %v1366 = vsel %vm1334, %v1174, %v1350
      %1367 = vst [vmem:[%s379] sm:$0xff] %v1351
      %1368 = vst [vmem:[%s379 + $0x8] sm:$0xff] %v1352
      %1369 = vst [vmem:[%s379 + $0x10] sm:$0xff] %v1353
      %1370 = vst [vmem:[%s379 + $0x18] sm:$0xff] %v1354
      %1371 = vst [vmem:[%s379 + $0x20] sm:$0xff] %v1355
      %1372 = vst [vmem:[%s379 + $0x28] sm:$0xff] %v1356
      %1373 = vst [vmem:[%s379 + $0x30] sm:$0xff] %v1357
      %1374 = vst [vmem:[%s379 + $0x38] sm:$0xff] %v1358
      %1375 = vst [vmem:[%s379 + $0x40] sm:$0xff] %v1359
      %1376 = vst [vmem:[%s379 + $0x48] sm:$0xff] %v1360
      %1377 = vst [vmem:[%s379 + $0x50] sm:$0xff] %v1361
      %1378 = vst [vmem:[%s379 + $0x58] sm:$0xff] %v1362
      %1379 = vst [vmem:[%s379 + $0x60] sm:$0xff] %v1363
      %1380 = vst [vmem:[%s379 + $0x68] sm:$0xff] %v1364
      %1381 = vst [vmem:[%s379 + $0x70] sm:$0xff] %v1365
      %1382 = vst [vmem:[%s379 + $0x78] sm:$0xff] %v1366
      %vm1383 = vcmp.gt.f32.partialorder %v1303, 0.0
      %vm1384 = vcmp.gt.f32.partialorder %v1304, 0.0
      %vm1385 = vcmp.gt.f32.partialorder %v1305, 0.0
      %vm1386 = vcmp.gt.f32.partialorder %v1306, 0.0
      %vm1387 = vcmp.gt.f32.partialorder %v1307, 0.0
      %vm1388 = vcmp.gt.f32.partialorder %v1308, 0.0
      %vm1389 = vcmp.gt.f32.partialorder %v1309, 0.0
      %vm1390 = vcmp.gt.f32.partialorder %v1310, 0.0
      %vm1391 = vcmp.gt.f32.partialorder %v1311, 0.0
      %vm1392 = vcmp.gt.f32.partialorder %v1312, 0.0
      %vm1393 = vcmp.gt.f32.partialorder %v1313, 0.0
      %vm1394 = vcmp.gt.f32.partialorder %v1314, 0.0
      %vm1395 = vcmp.gt.f32.partialorder %v1315, 0.0
      %vm1396 = vcmp.gt.f32.partialorder %v1316, 0.0
      %vm1397 = vcmp.gt.f32.partialorder %v1317, 0.0
      %vm1398 = vcmp.gt.f32.partialorder %v1318, 0.0
      %v1399 = vmul.f32 %v1303, 0.01
      %v1400 = vmul.f32 %v1304, 0.01
      %v1401 = vmul.f32 %v1305, 0.01
      %v1402 = vmul.f32 %v1306, 0.01
      %v1403 = vmul.f32 %v1307, 0.01
      %v1404 = vmul.f32 %v1308, 0.01
      %v1405 = vmul.f32 %v1309, 0.01
      %v1406 = vmul.f32 %v1310, 0.01
      %v1407 = vmul.f32 %v1311, 0.01
      %v1408 = vmul.f32 %v1312, 0.01
      %v1409 = vmul.f32 %v1313, 0.01
      %v1410 = vmul.f32 %v1314, 0.01
      %v1411 = vmul.f32 %v1315, 0.01
      %v1412 = vmul.f32 %v1316, 0.01
      %v1413 = vmul.f32 %v1317, 0.01
      %v1414 = vmul.f32 %v1318, 0.01
      %v1415 = vsel %vm1383, %v1303, %v1399
      %v1416 = vsel %vm1384, %v1304, %v1400
      %v1417 = vsel %vm1385, %v1305, %v1401
      %v1418 = vsel %vm1386, %v1306, %v1402
      %v1419 = vsel %vm1387, %v1307, %v1403
      %v1420 = vsel %vm1388, %v1308, %v1404
      %v1421 = vsel %vm1389, %v1309, %v1405
      %v1422 = vsel %vm1390, %v1310, %v1406
      %v1423 = vsel %vm1391, %v1311, %v1407
      %v1424 = vsel %vm1392, %v1312, %v1408
      %v1425 = vsel %vm1393, %v1313, %v1409
      %v1426 = vsel %vm1394, %v1314, %v1410
      %v1427 = vsel %vm1395, %v1315, %v1411
      %v1428 = vsel %vm1396, %v1316, %v1412
      %v1429 = vsel %vm1397, %v1317, %v1413
      %v1430 = vsel %vm1398, %v1318, %v1414
      %1431 = vst [vmem:[%s385] sm:$0xff] %v1415
      %1432 = vst [vmem:[%s385 + $0x8] sm:$0xff] %v1416
      %1433 = vst [vmem:[%s385 + $0x10] sm:$0xff] %v1417
      %1434 = vst [vmem:[%s385 + $0x18] sm:$0xff] %v1418
      %1435 = vst [vmem:[%s385 + $0x20] sm:$0xff] %v1419
      %1436 = vst [vmem:[%s385 + $0x28] sm:$0xff] %v1420
      %1437 = vst [vmem:[%s385 + $0x30] sm:$0xff] %v1421
      %1438 = vst [vmem:[%s385 + $0x38] sm:$0xff] %v1422
      %1439 = vst [vmem:[%s385 + $0x40] sm:$0xff] %v1423
      %1440 = vst [vmem:[%s385 + $0x48] sm:$0xff] %v1424
      %1441 = vst [vmem:[%s385 + $0x50] sm:$0xff] %v1425
      %1442 = vst [vmem:[%s385 + $0x58] sm:$0xff] %v1426
      %1443 = vst [vmem:[%s385 + $0x60] sm:$0xff] %v1427
      %1444 = vst [vmem:[%s385 + $0x68] sm:$0xff] %v1428
      %1445 = vst [vmem:[%s385 + $0x70] sm:$0xff] %v1429
      %1446 = vst [vmem:[%s385 + $0x78] sm:$0xff] %v1430
      %s1447 = smul.u32 16, %s19
      %p1448 = scmp.lt.s32.totalorder %s1447, 63
      %s1449 = scalar_select %p1448, %s1447, 63
      %s1450 = smul.addr %s1449, 8
      %s1451 = scalar_lea.vmem %s6, %s1450
      %s1452 = smul.u32 16, %s19
      %p1453 = scmp.lt.s32.totalorder %s1452, 63
      %s1454 = scalar_select %p1453, %s1452, 63
      %s1455 = smul.addr %s1454, 8
      %s1456 = scalar_lea.vmem %s7, %s1455
      // Predicated region
      $region45: #{graph_layer_forward.1} parent=43 // pred_check
        %p1457 = pneg %p188
      $region46: #{graph_layer_forward.1} parent=43 // pred_check_branch
        %1459 = sbr.rel (%p1457) target = $region48
      $region47: #{graph_layer_forward.1} parent=43 // pred_region
        %s1460 = smul.u32 16, %s19
      $region48: #{graph_layer_forward.1} parent=43 // pred_fallthru
        _
      // Predicated region
      $region49: #{graph_layer_forward.1} parent=43 // pred_check
        %p1461 = pneg %p214
      $region50: #{graph_layer_forward.1} parent=43 // pred_check_branch
        %1463 = sbr.rel (%p1461) target = $region52
      $region51: #{graph_layer_forward.1} parent=43 // pred_region
        %s1464 = smul.u32 16, %s19
      $region52: #{graph_layer_forward.1} parent=43 // pred_fallthru
        _
    $region44: #{graph_layer_forward.1} parent=5 // pred_fallthru
      _
    %p1465 = scmp.le.s32.totalorder 2, %s14
    // Predicated region
    $region53: #{graph_layer_forward.1} parent=5 // pred_check
      %p1466 = pneg %p1465
    $region54: #{graph_layer_forward.1} parent=5 // pred_check_branch
      %1468 = sbr.rel (%p1466) target = $region56
    $region55: #{graph_layer_forward.1} parent=5 // pred_region
      %s1469 = ssub.s32 %s14, 2
      // Predicated region
      $region57: #{graph_layer_forward.1} parent=55 // pred_check
        %p1470 = pneg %p194
      $region58: #{graph_layer_forward.1} parent=55 // pred_check_branch
        %1472 = sbr.rel (%p1470) target = $region60
      $region59: #{graph_layer_forward.1} parent=55 // pred_region
        %s1473 = smul.u32 16, %s20
        %p1474 = scmp.lt.s32.totalorder %s1473, 63
        %s1475 = scalar_select %p1474, %s1473, 63
        %s1476 = smul.addr %s1475, 8
        %s1477 = scalar_lea.vmem %s6, %s1476
      $region60: #{graph_layer_forward.1} parent=55 // pred_fallthru
        _
      // Predicated region
      $region61: #{graph_layer_forward.1} parent=55 // pred_check
        %p1478 = pneg %p220
      $region62: #{graph_layer_forward.1} parent=55 // pred_check_branch
        %1480 = sbr.rel (%p1478) target = $region64
      $region63: #{graph_layer_forward.1} parent=55 // pred_region
        %s1481 = smul.u32 16, %s20
        %p1482 = scmp.lt.s32.totalorder %s1481, 63
        %s1483 = scalar_select %p1482, %s1481, 63
        %s1484 = smul.addr %s1483, 8
        %s1485 = scalar_lea.vmem %s7, %s1484
      $region64: #{graph_layer_forward.1} parent=55 // pred_fallthru
        _
    $region56: #{graph_layer_forward.1} parent=5 // pred_fallthru
      _
  $region6: #{graph_layer_forward.1} parent=0 // loop_footer
    %s18 = sadd.s32 1, %s14
  $region7: #{graph_layer_forward.1} parent=0 // loop_footer_branch
    %13 = sbr.rel target = $region3
  $region8: #{graph_layer_forward.1} parent=0 // loop_exit
    _

</llo_original>
